<compile_context>
chip_gen: v6e
topology: v6e:2x2x1
jax: 0.10.0
libtpu: 0.0.40
codegen_flags: <defaults>
</compile_context>

<pallas_src>
import functools

import jax
import jax.numpy as jnp
import numpy as np
from jax import lax
from jax.experimental import pallas as pl
from jax.experimental.pallas import tpu as pltpu


def _round_up(x, m):
    return (x + m - 1) // m * m


# ---------------------------------------------------------------------------
# Kernel 1 (prep, one-shot): binarize the group-assignment logits, build the
# (Cin, Cout) group map, fold it into the conv weights (bf16 out).  Gridded
# over the KH*KW taps so per-step VMEM is bounded (v7x: 64 MiB physical VMEM);
# the tiny mask matmul is recomputed per tap, negligible one-time work.
# ---------------------------------------------------------------------------
def _prep_weight_kernel(out_assign_ref, in_assign_ref, w_ref, wm_ref):
    def binarize(a):
        a = a.astype(jnp.float32)
        # softmax is strictly monotone -> binarize on the raw logits directly
        # (same argmax set as binarize(softmax(.)), avoids exp + float-equality
        # hazards).  Ties produce multi-hot rows, matching the PyTorch module.
        return (a == jnp.max(a, axis=1, keepdims=True)).astype(jnp.float32)

    b_out = binarize(out_assign_ref[...])                               # (Cout, G)
    b_in = binarize(in_assign_ref[...])                                 # (Cin,  G)
    m = jnp.dot(b_in, b_out.T, preferred_element_type=jnp.float32)     # (Cin, Cout)
    wm_ref[...] = (w_ref[...] * m).astype(wm_ref.dtype)


def prep_masked_weights(out_assign, in_assign, weight_oihw):
    """OIHW f32 weights -> (KH*KW, Cin, Cout) bf16 weights with the group mask folded in."""
    cout, cin, kh_sz, kw_sz = weight_oihw.shape
    groups = out_assign.shape[1]
    kk = kh_sz * kw_sz
    w_kkio = jnp.transpose(weight_oihw, (2, 3, 1, 0)).astype(jnp.float32)
    w_kkio = w_kkio.reshape(kk, cin, cout)
    return pl.pallas_call(
        _prep_weight_kernel,
        out_shape=jax.ShapeDtypeStruct((kk, cin, cout), jnp.bfloat16),
        grid=(kk,),
        in_specs=[
            pl.BlockSpec((cout, groups), lambda k: (0, 0)),
            pl.BlockSpec((cin, groups), lambda k: (0, 0)),
            pl.BlockSpec((None, cin, cout), lambda k: (k, 0, 0)),
        ],
        out_specs=pl.BlockSpec((None, cin, cout), lambda k: (k, 0, 0)),
        compiler_params=pltpu.CompilerParams(
            dimension_semantics=("arbitrary",),
            vmem_limit_bytes=32 * 1024 * 1024),
    )(out_assign.astype(jnp.float32), in_assign.astype(jnp.float32), w_kkio)


# ---------------------------------------------------------------------------
# Kernel 2: tiled conv with pre-masked bf16 weights, one im2col matmul / step.
#   x_ref: (Hp, Wp, Cin)       bf16 -- full padded image of this batch element
#   w_ref: (KH*KW*Cin, TC)     bf16 -- im2col-ordered, group mask already folded
#   b_ref: (1, TC)             f32  -- bias slice
#   o_ref: (TH, Wout_p, TC)    bf16 -- output tile (lane-dense stores)
# ---------------------------------------------------------------------------
def _flgc_conv_kernel(x_ref, w_ref, b_ref, o_ref, *, kh_sz, kw_sz, stride, dilation):
    th, w_out, tc = o_ref.shape          # padded / aligned tile sizes
    cin = x_ref.shape[-1]
    i = pl.program_id(2)
    row0 = pl.multiple_of(i * th * stride, th * stride)

    # In-kernel im2col: concatenate the KH*KW shifted taps along the contraction
    # (lane) axis -> ONE MXU matmul with K = KH*KW*Cin (no per-tap matmuls, no
    # VALU accumulate chain).  K index = (kh*KW + kw)*Cin + c matches the
    # (KK, Cin, Cout) -> (KK*Cin, Cout) weight reshape done in the wrapper.
    h_span = (th - 1) * stride + 1
    w_span = (w_out - 1) * stride + 1
    cols = []
    for kh in range(kh_sz):
        for kw in range(kw_sz):
            x_sl = x_ref[pl.ds(row0 + kh * dilation, h_span),
                         pl.ds(kw * dilation, w_span), :]       # (h_span, w_span, cin)
            if stride > 1:
                # TODO(synk): stride > 1 relies on strided value-slicing along the
                # sublane (W) axis; only stride == 1 is exercised here.
                x_sl = x_sl[::stride, ::stride, :]
            # w_out is padded to a multiple of 8 (sublane) -> free relayout.
            cols.append(x_sl.reshape(th * w_out, cin))
    x_cols = jnp.concatenate(cols, axis=-1)                     # (th*w_out, KK*Cin) bf16

    # f32 accumulator is th*w_out*tc*4 bytes (= 128 KiB at the default tile);
    # if tiles are enlarged further, move it to a VMEM scratch to avoid spills.
    acc = jnp.dot(x_cols, w_ref[...], preferred_element_type=jnp.float32)
    acc = acc + b_ref[...]                                      # (1, tc) broadcast
    o_ref[...] = acc.reshape(th, w_out, tc).astype(o_ref.dtype)


def flgc2d_forward(x_nchw, params, *, stride=1, padding=0, dilation=1,
                   row_tile=16, cout_tile=128):
    weight = params["weight"]            # (Cout, Cin, KH, KW)  (PyTorch OIHW)
    bias = params["bias"]                # (Cout,)
    cout, cin, kh_sz, kw_sz = weight.shape
    kk = kh_sz * kw_sz
    n, _, h, w = x_nchw.shape

    h_out = (h + 2 * padding - dilation * (kh_sz - 1) - 1) // stride + 1
    w_out = (w + 2 * padding - dilation * (kw_sz - 1) - 1) // stride + 1

    # --- Kernel 1 (one-shot): fold the learned group mask into the weights. ---
    w_masked = prep_masked_weights(params["out_assign"], params["in_assign"], weight)

    # --- tiling / alignment glue ---
    tc = cout_tile                       # NOTE: raise to 256 on v6e/v7x when Cout >= 256.
    cout_p = _round_up(cout, tc)         # lane-dense (unmasked) output stores
    c_tiles = cout_p // tc

    th = min(row_tile, h_out)            # output rows per grid step
    n_h_tiles = pl.cdiv(h_out, th)
    th_in = (th - 1) * stride + (kh_sz - 1) * dilation + 1

    w_out_p = _round_up(w_out, 8)        # sublane-aligned -> free in-kernel reshapes
    wp_needed = (kw_sz - 1) * dilation + (w_out_p - 1) * stride + 1
    h_needed = (n_h_tiles - 1) * th * stride + th_in

    x_nhwc = jnp.transpose(x_nchw, (0, 2, 3, 1)).astype(jnp.bfloat16)
    hp = max(h + 2 * padding, h_needed)
    wp = max(w + 2 * padding, wp_needed)
    x_pad = jnp.pad(x_nhwc, ((0, 0),
                             (padding, hp - h - padding),
                             (padding, wp - w - padding),
                             (0, 0)))

    # im2col-ordered weights: (KK*Cin, Cout_p) bf16, K index = (kh*KW + kw)*Cin + c.
    w2d = jnp.pad(w_masked, ((0, 0), (0, 0), (0, cout_p - cout))).reshape(kk * cin, cout_p)
    bias2d = jnp.pad(bias.astype(jnp.float32).reshape(1, cout),
                     ((0, 0), (0, cout_p - cout)))              # (1, Cout_p) f32

    kernel = functools.partial(_flgc_conv_kernel, kh_sz=kh_sz, kw_sz=kw_sz,
                               stride=stride, dilation=dilation)

    flops = 2 * n * h_out * w_out * kk * cin * cout
    bytes_accessed = int(x_pad.size * 2 + w2d.size * 2 + bias2d.size * 4
                         + n * n_h_tiles * th * w_out_p * cout_p * 2)

    out_padded = pl.pallas_call(
        kernel,
        out_shape=jax.ShapeDtypeStruct((n, n_h_tiles * th, w_out_p, cout_p), jnp.bfloat16),
        # Grid order (n, c, i): weight/bias block index depends only on c, so the
        # weight block stays VMEM-resident across row tiles; the padded image of
        # one batch element is DMA'd once per b and revisited across (c, i).
        # All axes "parallel" -> megacore split on v7x (outermost axis n=2 is even).
        grid=(n, c_tiles, n_h_tiles),
        in_specs=[
            pl.BlockSpec((None, hp, wp, cin), lambda b, c, i: (b, 0, 0, 0)),
            pl.BlockSpec((kk * cin, tc), lambda b, c, i: (0, c)),
            pl.BlockSpec((1, tc), lambda b, c, i: (0, c)),
        ],
        out_specs=pl.BlockSpec((None, th, w_out_p, tc), lambda b, c, i: (b, i, 0, c)),
        compiler_params=pltpu.CompilerParams(
            dimension_semantics=("parallel", "parallel", "parallel"),
            vmem_limit_bytes=32 * 1024 * 1024),   # within v7x's 64 MiB physical VMEM
        cost_estimate=pl.CostEstimate(flops=flops, transcendentals=0,
                                      bytes_accessed=bytes_accessed),
    )(x_pad, w2d, bias2d)

    out_nhwc = out_padded[:, :h_out, :w_out, :cout].astype(jnp.float32)
    return jnp.transpose(out_nhwc, (0, 3, 1, 2))                # back to NCHW


# ---------------------------------------------------------------------------
# Pure-JAX reference (matches PyTorch Flgc2d.forward semantics, f32).
# ---------------------------------------------------------------------------
def reference_forward(x_nchw, params, *, stride, padding, dilation):
    def binarize_softmax(a):
        sm = jax.nn.softmax(a, axis=1)
        return (sm == jnp.max(sm, axis=1, keepdims=True)).astype(jnp.float32)

    b_out = binarize_softmax(params["out_assign"])
    b_in = binarize_softmax(params["in_assign"])
    m = b_out @ b_in.T                                           # (Cout, Cin)
    w_masked = params["weight"] * m[:, :, None, None]
    out = lax.conv_general_dilated(
        x_nchw, w_masked,
        window_strides=(stride, stride),
        padding=[(padding, padding), (padding, padding)],
        rhs_dilation=(dilation, dilation),
        dimension_numbers=("NCHW", "OIHW", "NCHW"))
    return out + params["bias"][None, :, None, None]


if __name__ == "__main__":
    # Small, deterministic synthetic configuration.
    N, C_IN, C_OUT, H, W = 2, 4, 8, 16, 16
    K, STRIDE, PAD, DIL, GROUPS = 3, 1, 1, 1, 8

    key = jax.random.PRNGKey(0)
    k_x, k_in, k_out, k_w, k_b = jax.random.split(key, 5)

    x = jax.random.normal(k_x, (N, C_IN, H, W), dtype=jnp.float32)
    params = {
        "in_assign": jax.random.normal(k_in, (C_IN, GROUPS), dtype=jnp.float32),
        "out_assign": jax.random.normal(k_out, (C_OUT, GROUPS), dtype=jnp.float32),
        "weight": 0.1 * jax.random.normal(k_w, (C_OUT, C_IN, K, K),
                                          dtype=jnp.float32),
        "bias": 0.1 * jax.random.normal(k_b, (C_OUT,), dtype=jnp.float32),
    }

    out = flgc2d_forward(x, params, stride=STRIDE, padding=PAD, dilation=DIL)
    out = jax.block_until_ready(out)

    ref = reference_forward(x, params, stride=STRIDE, padding=PAD, dilation=DIL)
    ref = jax.block_until_ready(ref)

    assert out.shape == (N, C_OUT, H, W), out.shape
    # bf16 MXU inputs + bf16 output store with f32 accumulation vs f32 reference.
    assert np.allclose(np.asarray(out), np.asarray(ref), atol=2e-2, rtol=2e-2), (
        "mismatch vs reference: max abs err = %g"
        % float(np.max(np.abs(np.asarray(out) - np.asarray(ref)))))

    print("KERNEL_OK")
</pallas_src>

<mosaic_0001>
module attributes {stable_mosaic.version = 11 : i64} {
  func.func @_prep_weight_kernel(%arg0: i32, %arg1: memref<8x8xf32, #tpu.memory_space<vmem>>, %arg2: memref<4x8xf32, #tpu.memory_space<vmem>>, %arg3: memref<1x4x8xf32, #tpu.memory_space<vmem>>, %arg4: memref<1x4x8xbf16, #tpu.memory_space<vmem>>) attributes {dimension_semantics = [#tpu.dimension_semantics<arbitrary>], iteration_bounds = array<i64: 9>, scalar_prefetch = 0 : i64, scratch_operands = 0 : i64, tpu.core_type = #tpu.core_type<tc>, window_params = [{pipeline_mode = #tpu.pipeline_mode<synchronous>, transform_indices = @transform_0, window_bounds = array<i64: 8, 8>}, {pipeline_mode = #tpu.pipeline_mode<synchronous>, transform_indices = @transform_1, window_bounds = array<i64: 4, 8>}, {transform_indices = @transform_2, window_bounds = array<i64: 1, 4, 8>}, {transform_indices = @transform_3, window_bounds = array<i64: 1, 4, 8>}]} {
    %c0 = arith.constant 0 : index
    %c0_0 = arith.constant 0 : index
    %0 = vector.load %arg1[%c0, %c0_0] : memref<8x8xf32, #tpu.memory_space<vmem>>, vector<8x8xf32>
    %cst = arith.constant dense<0xFF800000> : vector<8xf32>
    %1 = vector.multi_reduction <maximumf>, %0, %cst [1] : vector<8x8xf32> to vector<8xf32>
    %2 = vector.shape_cast %1 : vector<8xf32> to vector<8x1xf32>
    %3 = vector.broadcast %2 : vector<8x1xf32> to vector<8x8xf32>
    %4 = arith.cmpf oeq, %0, %3 : vector<8x8xf32>
    %5 = arith.extui %4 : vector<8x8xi1> to vector<8x8xi32>
    %6 = arith.sitofp %5 : vector<8x8xi32> to vector<8x8xf32>
    %c0_1 = arith.constant 0 : index
    %c0_2 = arith.constant 0 : index
    %7 = vector.load %arg2[%c0_1, %c0_2] : memref<4x8xf32, #tpu.memory_space<vmem>>, vector<4x8xf32>
    %cst_3 = arith.constant dense<0xFF800000> : vector<4xf32>
    %8 = vector.multi_reduction <maximumf>, %7, %cst_3 [1] : vector<4x8xf32> to vector<4xf32>
    %9 = vector.shape_cast %8 : vector<4xf32> to vector<4x1xf32>
    %10 = vector.broadcast %9 : vector<4x1xf32> to vector<4x8xf32>
    %11 = arith.cmpf oeq, %7, %10 : vector<4x8xf32>
    %12 = arith.extui %11 : vector<4x8xi1> to vector<4x8xi32>
    %13 = arith.sitofp %12 : vector<4x8xi32> to vector<4x8xf32>
    %14 = tpu.transpose %6, [1, 0] : vector<8x8xf32> -> vector<8x8xf32>
    %cst_4 = arith.constant dense<0.000000e+00> : vector<4x8xf32>
    %15 = tpu.matmul %13, %14, %cst_4 {dimension_numbers = #tpu.dot_dimension_numbers<[1], [0], [0], [1], [0, 0, 1, 1], [], []>} : vector<4x8xf32>, vector<8x8xf32>, vector<4x8xf32> -> vector<4x8xf32>
    %c0_5 = arith.constant 0 : index
    %c0_6 = arith.constant 0 : index
    %c0_7 = arith.constant 0 : index
    %16 = vector.load %arg3[%c0_5, %c0_6, %c0_7] : memref<1x4x8xf32, #tpu.memory_space<vmem>>, vector<1x4x8xf32>
    %17 = vector.shape_cast %16 : vector<1x4x8xf32> to vector<4x8xf32>
    %18 = arith.mulf %17, %15 : vector<4x8xf32>
    %19 = arith.truncf %18 : vector<4x8xf32> to vector<4x8xbf16>
    %c0_8 = arith.constant 0 : index
    %c0_9 = arith.constant 0 : index
    %c0_10 = arith.constant 0 : index
    %20 = vector.load %arg4[%c0_8, %c0_9, %c0_10] : memref<1x4x8xbf16, #tpu.memory_space<vmem>>, vector<1x4x8xbf16>
    %21 = vector.shape_cast %20 : vector<1x4x8xbf16> to vector<4x8xbf16>
    %22 = vector.shape_cast %19 : vector<4x8xbf16> to vector<1x4x8xbf16>
    tpu.vector_store %arg4[%c0_8, %c0_9, %c0_10], %22 {strides = array<i32>} : memref<1x4x8xbf16, #tpu.memory_space<vmem>>, vector<1x4x8xbf16>,
    return
  }
  func.func @transform_0(%arg0: i32) -> (i32, i32) {
    %c0_i32 = arith.constant 0 : i32
    %c0_i32_0 = arith.constant 0 : i32
    %c0_i32_1 = arith.constant 0 : i32
    return %c0_i32, %c0_i32_0 : i32, i32
  }
  func.func @transform_1(%arg0: i32) -> (i32, i32) {
    %c0_i32 = arith.constant 0 : i32
    %c0_i32_0 = arith.constant 0 : i32
    %c0_i32_1 = arith.constant 0 : i32
    return %c0_i32, %c0_i32_0 : i32, i32
  }
  func.func @transform_2(%arg0: i32) -> (i32, i32, i32) {
    %c0_i32 = arith.constant 0 : i32
    %c0_i32_0 = arith.constant 0 : i32
    %c0_i32_1 = arith.constant 0 : i32
    return %arg0, %c0_i32, %c0_i32_0 : i32, i32, i32
  }
  func.func @transform_3(%arg0: i32) -> (i32, i32, i32) {
    %c0_i32 = arith.constant 0 : i32
    %c0_i32_0 = arith.constant 0 : i32
    %c0_i32_1 = arith.constant 0 : i32
    return %arg0, %c0_i32, %c0_i32_0 : i32, i32, i32
  }
}

</mosaic_0001>

<llo_original>
// kernel: tpu_custom_call.1
$region0: #{tpu_custom_call.1}
  #allocation0 [shape = 'u32[]', space=smem, size = 0x4, offset = 0x4, fixed_abs, tag = 'smem constant byte address 0x4 - core index']
  #allocation1 [shape = 'u32[144,128]{1,0:T(1,128)}', space=vmem, size = 0x12000, scoped, tag = 'internal scratch']
  %s0 = inlined_call_operand.vmem [shape: f32[8,8], index: 0, kind: input, shape index: {}]
  %s1 = inlined_call_operand.vmem [shape: f32[4,8], index: 1, kind: input, shape index: {}]
  %s2 = inlined_call_operand.vmem [shape: f32[9,4,8], index: 2, kind: input, shape index: {}]
  %s3 = inlined_call_operand.vmem [shape: bf16[9,4,8], index: 3, kind: output, shape index: {}]
  %s4 = sld [smem:[#allocation0]]
  $region45: #{tpu_custom_call.1} parent=0
    _
  %s6 = ssub.s32 1, %s4
  %s7 = scalar_select 0, %s6, %s4
  loop: start=0, step=1, limit=11
  $region2: #{tpu_custom_call.1} parent=0 // loop_pre_header
    _
  $region3: #{tpu_custom_call.1} parent=0 // loop_header
    %s9 = sphi 0, %s13
    %p10 = scmp.ge.s32.totalorder %s9, 11
    %s17 = sphi 0, %s17
    %s19 = sphi 0, %s17
    %s20 = sphi 0, %s19
    %s34 = sphi 0, %s20
    %s38 = sphi 0, %s38
    %s40 = sphi 0, %s38
    %s41 = sphi 0, %s40
    %s55 = sphi 0, %s41
    %s61 = sphi 0, %s63
    %s64 = sphi 0, %s61
    %s65 = sphi 0, %s64
    %s81 = sphi 0, %s65
    %s87 = sphi 0, %s89
    %s90 = sphi 0, %s87
    %s91 = sphi 0, %s90
    %s107 = sphi 0, %s91
  $region4: #{tpu_custom_call.1} parent=0 // loop_header_branch
    %12 = sbr.rel (%p10) target = $region8
  $region5: #{tpu_custom_call.1} parent=0 // loop_body
    %s14 = ssub.s32 %s9, 1
    %s15 = ssub.s32 %s9, 2
    %s16 = sadd.s32 %s9, 1
    %s18 = sadd.s32 %s17, 1
    %p21 = scmp.eq.s32.totalorder %s9, 8
    %p22 = scmp.ne.s32.totalorder %s17, %s19
    %p23 = scmp.eq.s32.totalorder %s9, 0
    %p24 = por %p22, %p23
    %p25 = scmp.ne.s32.totalorder %s17, %s19
    %p26 = scmp.eq.s32.totalorder %s14, 8
    %p27 = por %p25, %p26
    %p28 = scmp.ne.s32.totalorder %s19, %s20
    %p29 = scmp.eq.s32.totalorder %s14, 0
    %p30 = por %p28, %p29
    %p31 = scmp.ne.s32.totalorder %s19, %s20
    %p32 = scmp.eq.s32.totalorder %s15, 8
    %p33 = por %p31, %p32
    %p35 = scmp.ne.s32.totalorder %s20, %s34
    %p36 = scmp.eq.s32.totalorder %s15, 0
    %p37 = por %p35, %p36
    %s39 = sadd.s32 %s38, 1
    %p42 = scmp.eq.s32.totalorder %s9, 8
    %p43 = scmp.ne.s32.totalorder %s38, %s40
    %p44 = scmp.eq.s32.totalorder %s9, 0
    %p45 = por %p43, %p44
    %p46 = scmp.ne.s32.totalorder %s38, %s40
    %p47 = scmp.eq.s32.totalorder %s14, 8
    %p48 = por %p46, %p47
    %p49 = scmp.ne.s32.totalorder %s40, %s41
    %p50 = scmp.eq.s32.totalorder %s14, 0
    %p51 = por %p49, %p50
    %p52 = scmp.ne.s32.totalorder %s40, %s41
    %p53 = scmp.eq.s32.totalorder %s15, 8
    %p54 = por %p52, %p53
    %p56 = scmp.ne.s32.totalorder %s41, %s55
    %p57 = scmp.eq.s32.totalorder %s15, 0
    %p58 = por %p56, %p57
    %s59 = ssub.s32 %s9, %s16
    %p60 = scmp.eq.s32.totalorder %s59, 0
    %s62 = sadd.s32 %s61, 1
    %s63 = scalar_select %p60, %s61, %s62
    %p66 = pneg %p60
    %p67 = scmp.eq.s32.totalorder %s9, 8
    %p68 = por %p66, %p67
    %p69 = scmp.ne.s32.totalorder %s61, %s64
    %p70 = scmp.eq.s32.totalorder %s9, 0
    %p71 = por %p69, %p70
    %p72 = scmp.ne.s32.totalorder %s61, %s64
    %p73 = scmp.eq.s32.totalorder %s14, 8
    %p74 = por %p72, %p73
    %p75 = scmp.ne.s32.totalorder %s64, %s65
    %p76 = scmp.eq.s32.totalorder %s14, 0
    %p77 = por %p75, %p76
    %p78 = scmp.ne.s32.totalorder %s64, %s65
    %p79 = scmp.eq.s32.totalorder %s15, 8
    %p80 = por %p78, %p79
    %p82 = scmp.ne.s32.totalorder %s65, %s81
    %p83 = scmp.eq.s32.totalorder %s15, 0
    %p84 = por %p82, %p83
    %s85 = ssub.s32 %s9, %s16
    %p86 = scmp.eq.s32.totalorder %s85, 0
    %s88 = sadd.s32 %s87, 1
    %s89 = scalar_select %p86, %s87, %s88
    %p92 = pneg %p86
    %p93 = scmp.eq.s32.totalorder %s9, 8
    %p94 = por %p92, %p93
    %p95 = scmp.ne.s32.totalorder %s87, %s90
    %p96 = scmp.eq.s32.totalorder %s9, 0
    %p97 = por %p95, %p96
    %p98 = scmp.ne.s32.totalorder %s87, %s90
    %p99 = scmp.eq.s32.totalorder %s14, 8
    %p100 = por %p98, %p99
    %p101 = scmp.ne.s32.totalorder %s90, %s91
    %p102 = scmp.eq.s32.totalorder %s14, 0
    %p103 = por %p101, %p102
    %p104 = scmp.ne.s32.totalorder %s90, %s91
    %p105 = scmp.eq.s32.totalorder %s15, 8
    %p106 = por %p104, %p105
    %p108 = scmp.ne.s32.totalorder %s91, %s107
    %p109 = scmp.eq.s32.totalorder %s15, 0
    %p110 = por %p108, %p109
    %p111 = scmp.le.s32.totalorder 1, %s9
    %p112 = scmp.lt.s32.totalorder %s9, 10
    %p113 = pnand %p111, %p112
    %p114 = pneg %p113
    // Predicated region
    $region9: #{tpu_custom_call.1} parent=5 // pred_check
      _
    $region10: #{tpu_custom_call.1} parent=5 // pred_check_branch
      %116 = sbr.rel (%p113) target = $region12
    $region11: #{tpu_custom_call.1} parent=5 // pred_region
      %s117 = ssub.s32 %s9, 1
      // Predicated region
      $region13: #{tpu_custom_call.1} parent=11 // pred_check
        %p118 = pneg %p30
      $region14: #{tpu_custom_call.1} parent=11 // pred_check_branch
        %120 = sbr.rel (%p118) target = $region16
      $region15: #{tpu_custom_call.1} parent=11 // pred_region
        _
      $region16: #{tpu_custom_call.1} parent=11 // pred_fallthru
        _
      // Predicated region
      $region17: #{tpu_custom_call.1} parent=11 // pred_check
        %p121 = pneg %p51
      $region18: #{tpu_custom_call.1} parent=11 // pred_check_branch
        %123 = sbr.rel (%p121) target = $region20
      $region19: #{tpu_custom_call.1} parent=11 // pred_region
        _
      $region20: #{tpu_custom_call.1} parent=11 // pred_fallthru
        _
    $region12: #{tpu_custom_call.1} parent=5 // pred_fallthru
      _
    %p124 = scmp.lt.s32.totalorder %s9, 9
    // Predicated region
    $region21: #{tpu_custom_call.1} parent=5 // pred_check
      %p125 = pneg %p124
    $region22: #{tpu_custom_call.1} parent=5 // pred_check_branch
      %127 = sbr.rel (%p125) target = $region24
    $region23: #{tpu_custom_call.1} parent=5 // pred_region
      // Predicated region
      $region25: #{tpu_custom_call.1} parent=23 // pred_check
        %p128 = pneg %p71
      $region26: #{tpu_custom_call.1} parent=23 // pred_check_branch
        %130 = sbr.rel (%p128) target = $region28
      $region27: #{tpu_custom_call.1} parent=23 // pred_region
        %p131 = scmp.lt.s32.totalorder %s9, 8
        %s132 = scalar_select %p131, %s9, 8
        %s133 = smul.addr %s132, 4
        %s134 = scalar_lea.vmem %s2, %s133
      $region28: #{tpu_custom_call.1} parent=23 // pred_fallthru
        _
    $region24: #{tpu_custom_call.1} parent=5 // pred_fallthru
      _
    %p135 = scmp.le.s32.totalorder 1, %s9
    %p136 = scmp.lt.s32.totalorder %s9, 10
    %p137 = pnand %p135, %p136
    %p138 = pneg %p137
    // Predicated region
    $region29: #{tpu_custom_call.1} parent=5 // pred_check
      _
    $region30: #{tpu_custom_call.1} parent=5 // pred_check_branch
      %140 = sbr.rel (%p137) target = $region32
    $region31: #{tpu_custom_call.1} parent=5 // pred_region
      %s141 = ssub.s32 %s9, 1
      %p142 = pneg %p30
      %p143 = pneg %p27
      %p144 = pneg %p51
      %p145 = pneg %p48
      %p146 = scmp.lt.s32.totalorder %s14, 8
      %s147 = scalar_select %p146, %s14, 8
      %s148 = smul.addr %s147, 4
      %s149 = scalar_lea.vmem %s2, %s148
      %p150 = pneg %p77
      %p151 = pneg %p74
      %p152 = pneg %p103
      %p153 = pneg %p100
      %p154 = scmp.lt.s32.totalorder %s14, 8
      %s155 = scalar_select %p154, %s14, 8
      %s156 = smul.addr %s155, 2
      %s157 = scalar_lea.vmem %s3, %s156
      %p158 = scmp.lt.s32.totalorder %s14, 8
      %s159 = scalar_select %p158, %s14, 8
      %s160 = smul.addr %s159, 4
      %s161 = scalar_lea.vmem %s2, %s160
      %p162 = scmp.lt.s32.totalorder %s14, 8
      %s163 = scalar_select %p162, %s14, 8
      %s164 = smul.addr %s163, 2
      %s165 = scalar_lea.vmem %s3, %s164
      %v166 = vld [vmem:[%s0] sm:$0xff]
      %vm167 = vcmask 64512
      %v168 = vsel %vm167, %v166, -inf
      %169 = vmax.xlane.f32.xlu0 %v168
      %v170 = vpop.xlane.xlu0 %169
      %vm171 = vcmp.eq.f32.partialorder %v166, %v170
      %v172 = vsel %vm171, 1, 0
      %v173 = vcvt.s32.f32 %v172
      %v174 = vld [vmem:[%s1] sm:$0xf]
      %vm175 = vcmask 60416
      %v176 = vsel %vm175, %v174, -inf
      %177 = vmax.xlane.f32.xlu0 %v176
      %v178 = vpop.xlane.xlu0 %177
      %vm179 = vcmp.eq.f32.partialorder %v174, %v178
      %v180 = vsel %vm179, 1, 0
      %v181 = vcvt.s32.f32 %v180
      %v183 = vsel %vm167, %v181, 0
      %v186 = vsel %vm167, %v173, 0
      %188 = vmatprep.subr.mxu0 0.0
      %189 = vmatpush1.xpose.msra.mxu0 0.0
      %190 = vmatprep.subr.mxu0 0.0
      %191 = vmatpush1.xpose.msra.mxu0 0.0
      %192 = vmatprep.subr.mxu0 0.0
      %193 = vmatpush1.xpose.msra.mxu0 0.0
      %194 = vmatprep.subr.mxu0 0.0
      %195 = vmatpush1.xpose.msra.mxu0 0.0
      %196 = vmatprep.subr.mxu0 0.0
      %197 = vmatpush1.xpose.msra.mxu0 0.0
      %198 = vmatprep.subr.mxu0 0.0
      %199 = vmatpush1.xpose.msra.mxu0 0.0
      %200 = vmatprep.subr.mxu0 0.0
      %201 = vmatpush1.xpose.msra.mxu0 0.0
      %202 = vmatprep.subr.mxu0 0.0
      %203 = vmatpush1.xpose.msra.mxu0 0.0
      %204 = vmatprep.subr.mxu0 0.0
      %205 = vmatpush1.xpose.msra.mxu0 0.0
      %206 = vmatprep.subr.mxu0 0.0
      %207 = vmatpush1.xpose.msra.mxu0 0.0
      %208 = vmatprep.subr.mxu0 0.0
      %209 = vmatpush1.xpose.msra.mxu0 0.0
      %210 = vmatprep.subr.mxu0 0.0
      %211 = vmatpush1.xpose.msra.mxu0 0.0
      %212 = vmatprep.subr.mxu0 0.0
      %213 = vmatpush1.xpose.msra.mxu0 0.0
      %214 = vmatprep.subr.mxu0 0.0
      %215 = vmatpush1.xpose.msra.mxu0 0.0
      %216 = vmatprep.subr.mxu0 0.0
      %217 = vmatpush1.xpose.msra.mxu0 0.0
      %218 = vmatprep.subr.mxu0 0.0
      %219 = vmatpush1.xpose.msra.mxu0 %v186
      %220 = vmatprep.subr.mxu0 0.0
      %221 = vmatpush2.xpose.msra.mxu0 0.0
      %222 = vmatprep.subr.mxu0 0.0
      %223 = vmatpush2.xpose.msra.mxu0 0.0
      %224 = vmatprep.subr.mxu0 0.0
      %225 = vmatpush2.xpose.msra.mxu0 0.0
      %226 = vmatprep.subr.mxu0 0.0
      %227 = vmatpush2.xpose.msra.mxu0 0.0
      %228 = vmatprep.subr.mxu0 0.0
      %229 = vmatpush2.xpose.msra.mxu0 0.0
      %230 = vmatprep.subr.mxu0 0.0
      %231 = vmatpush2.xpose.msra.mxu0 0.0
      %232 = vmatprep.subr.mxu0 0.0
      %233 = vmatpush2.xpose.msra.mxu0 0.0
      %234 = vmatprep.subr.mxu0 0.0
      %235 = vmatpush2.xpose.msra.mxu0 0.0
      %236 = vmatprep.subr.mxu0 0.0
      %237 = vmatpush2.xpose.msra.mxu0 0.0
      %238 = vmatprep.subr.mxu0 0.0
      %239 = vmatpush2.xpose.msra.mxu0 0.0
      %240 = vmatprep.subr.mxu0 0.0
      %241 = vmatpush2.xpose.msra.mxu0 0.0
      %242 = vmatprep.subr.mxu0 0.0
      %243 = vmatpush2.xpose.msra.mxu0 0.0
      %244 = vmatprep.subr.mxu0 0.0
      %245 = vmatpush2.xpose.msra.mxu0 0.0
      %246 = vmatprep.subr.mxu0 0.0
      %247 = vmatpush2.xpose.msra.mxu0 0.0
      %248 = vmatprep.subr.mxu0 0.0
      %249 = vmatpush2.xpose.msra.mxu0 0.0
      %250 = vmatprep.subr.mxu0 0.0
      %251 = vmatpush2.xpose.msra.mxu0 0.0
      %252 = vmatprep.mubr.f32.mxu0 0.0
      %253 = vmatmul.mubr.f32.gmra.mxu0 %v183
      %v254 = vpop.f32.mrf.mxu0
      %v255 = vadd.f32 0.0, %v254
      %v256 = vpop.f32.mrf.mxu0
      %257 = vdwg.mxu0
      %v258 = vld [vmem:[%s161] sm:$0xf]
      %v259 = vmul.f32 %v258, %v255
      %v260 = vpack.c.bf16 %v259, %v259
      %vm261 = vcmask 58368
      %262 = vst.msk [vmem:[%s165] sm:$0x3] %vm261, %v260
      %p263 = scmp.lt.s32.totalorder %s14, 8
      %s264 = scalar_select %p263, %s14, 8
      %s265 = smul.addr %s264, 2
      %s266 = scalar_lea.vmem %s3, %s265
      // Predicated region
      $region33: #{tpu_custom_call.1} parent=31 // pred_check
        %p267 = pneg %p100
      $region34: #{tpu_custom_call.1} parent=31 // pred_check_branch
        %269 = sbr.rel (%p267) target = $region36
      $region35: #{tpu_custom_call.1} parent=31 // pred_region
        _
      $region36: #{tpu_custom_call.1} parent=31 // pred_fallthru
        _
    $region32: #{tpu_custom_call.1} parent=5 // pred_fallthru
      _
    %p270 = scmp.le.s32.totalorder 2, %s9
    // Predicated region
    $region37: #{tpu_custom_call.1} parent=5 // pred_check
      %p271 = pneg %p270
    $region38: #{tpu_custom_call.1} parent=5 // pred_check_branch
      %273 = sbr.rel (%p271) target = $region40
    $region39: #{tpu_custom_call.1} parent=5 // pred_region
      %s274 = ssub.s32 %s9, 2
      // Predicated region
      $region41: #{tpu_custom_call.1} parent=39 // pred_check
        %p275 = pneg %p106
      $region42: #{tpu_custom_call.1} parent=39 // pred_check_branch
        %277 = sbr.rel (%p275) target = $region44
      $region43: #{tpu_custom_call.1} parent=39 // pred_region
        %p278 = scmp.lt.s32.totalorder %s15, 8
        %s279 = scalar_select %p278, %s15, 8
        %s280 = smul.addr %s279, 2
        %s281 = scalar_lea.vmem %s3, %s280
      $region44: #{tpu_custom_call.1} parent=39 // pred_fallthru
        _
    $region40: #{tpu_custom_call.1} parent=5 // pred_fallthru
      _
  $region6: #{tpu_custom_call.1} parent=0 // loop_footer
    %s13 = sadd.s32 1, %s9
  $region7: #{tpu_custom_call.1} parent=0 // loop_footer_branch
    %8 = sbr.rel target = $region3
  $region8: #{tpu_custom_call.1} parent=0 // loop_exit
    _

</llo_original>
